<compile_context>
chip_gen: v6e
topology: v6e:2x2x1
jax: 0.10.0
libtpu: 0.0.40
codegen_flags: <defaults>
</compile_context>

<pallas_src>
import functools

import jax
import jax.numpy as jnp
from jax.experimental import pallas as pl
from jax.experimental.pallas import tpu as pltpu


def _round_up(x, m):
    return ((x + m - 1) // m) * m


# --------------------------------- Kernel ---------------------------------
def embed_node_kernel(x_ref, m_ref, w1_ref, b1_ref, w2_ref, b2_ref, o_ref,
                      *, vpu_first_layer):
    x = x_ref[...]                                              # (TM, D)

    if vpu_first_layer:
        # K = node_dim is tiny: an unrolled VPU FMA chain is cheaper than a
        # K<8 MXU matmul (wastes the 256-deep systolic array, extra drain).
        acc = x[:, 0:1] * w1_ref[0:1, :]                        # (TM, H)
        for k in range(1, x.shape[1]):
            acc = acc + x[:, k:k + 1] * w1_ref[k:k + 1, :]
        h = jax.nn.sigmoid(acc + b1_ref[...])
    else:
        h = jax.nn.sigmoid(
            jnp.dot(x, w1_ref[...], preferred_element_type=jnp.float32)
            + b1_ref[...])

    # Hidden layer on the MXU, default precision, f32 accumulation.
    y = jnp.tanh(
        jnp.dot(h, w2_ref[...], preferred_element_type=jnp.float32)
        + b2_ref[...])

    # Fused mask multiply (masks broadcast over the hidden/lane axis).
    o_ref[...] = (y * m_ref[...]).astype(o_ref.dtype)


# --------------------------------- Wrapper ---------------------------------
def embed_node_forward(params, nodes, masks, *, tile_rows=512):
    """nodes: (B, N, D) f32, masks: (B, N, 1) f32 -> (B, N, H) f32."""
    B, N, D = nodes.shape
    H = params["w1"].shape[1]
    R = B * N

    x = nodes.reshape(R, D)
    m = masks.reshape(R, 1).astype(jnp.float32)

    # Row tile: big (up to 512 rows) for pipelining efficiency; rows are
    # zero-padded to a tile multiple so every grid step is a full block
    # (padded rows are sliced off afterwards; they cost nothing semantically).
    TM = min(tile_rows, _round_up(R, 8))
    Rp = _round_up(R, TM)
    if Rp != R:
        x = jnp.pad(x, ((0, Rp - R), (0, 0)))
        m = jnp.pad(m, ((0, Rp - R), (0, 0)))

    grid = (Rp // TM,)
    kern = functools.partial(embed_node_kernel, vpu_first_layer=(D <= 16))

    out = pl.pallas_call(
        kern,
        out_shape=jax.ShapeDtypeStruct((Rp, H), jnp.float32),
        grid=grid,
        in_specs=[
            pl.BlockSpec((TM, D), lambda i: (i, 0)),     # node rows
            pl.BlockSpec((TM, 1), lambda i: (i, 0)),     # mask rows
            pl.BlockSpec((D, H), lambda i: (0, 0)),      # W1 (resident)
            pl.BlockSpec((1, H), lambda i: (0, 0)),      # b1
            pl.BlockSpec((H, H), lambda i: (0, 0)),      # W2 (resident)
            pl.BlockSpec((1, H), lambda i: (0, 0)),      # b2
        ],
        out_specs=pl.BlockSpec((TM, H), lambda i: (i, 0)),
        compiler_params=pltpu.CompilerParams(
            dimension_semantics=("parallel",)),
    )(x, m, params["w1"], params["b1"], params["w2"], params["b2"])

    return out[:R].reshape(B, N, H)


# ------------------------------ Params & reference ------------------------------
def init_params(key, node_dim, hidden_dim):
    ks = jax.random.split(key, 4)
    s = 0.2
    return {
        "w1": jax.random.normal(ks[0], (node_dim, hidden_dim), jnp.float32) * s,
        "b1": jax.random.normal(ks[1], (1, hidden_dim), jnp.float32) * s,
        "w2": jax.random.normal(ks[2], (hidden_dim, hidden_dim), jnp.float32) * s,
        "b2": jax.random.normal(ks[3], (1, hidden_dim), jnp.float32) * s,
    }


def reference_forward(p, nodes, masks):
    # f32 ground truth (highest precision) for validation.
    B, N, D = nodes.shape
    x = nodes.reshape(-1, D)
    h = jax.nn.sigmoid(
        jnp.dot(x, p["w1"], precision=jax.lax.Precision.HIGHEST) + p["b1"])
    y = jnp.tanh(
        jnp.dot(h, p["w2"], precision=jax.lax.Precision.HIGHEST) + p["b2"])
    return y.reshape(B, N, -1) * masks


if __name__ == "__main__":
    B, N, D, H = 2, 8, 4, 32
    key = jax.random.PRNGKey(0)
    kn, km, kp = jax.random.split(key, 3)
    nodes = jax.random.normal(kn, (B, N, D), jnp.float32)
    masks = (jax.random.uniform(km, (B, N, 1)) > 0.2).astype(jnp.float32)
    params = init_params(kp, D, H)

    z = embed_node_forward(params, nodes, masks)
    z = jax.block_until_ready(z)

    ref = reference_forward(params, nodes, masks)
    # Tolerance covers default-precision MXU passes in the kernel vs the
    # explicit f32 'highest'-precision reference (outputs are tanh-bounded).
    if not jnp.allclose(z, ref, atol=5e-3, rtol=5e-3):
        raise AssertionError("Pallas kernel output does not match JAX reference")
    print("KERNEL_OK")
</pallas_src>

<mosaic_0001>
module attributes {stable_mosaic.version = 11 : i64} {
  func.func @embed_node_kernel(%arg0: i32, %arg1: memref<16x4xf32, #tpu.memory_space<vmem>>, %arg2: memref<16x1xf32, #tpu.memory_space<vmem>>, %arg3: memref<4x32xf32, #tpu.memory_space<vmem>>, %arg4: memref<1x32xf32, #tpu.memory_space<vmem>>, %arg5: memref<32x32xf32, #tpu.memory_space<vmem>>, %arg6: memref<1x32xf32, #tpu.memory_space<vmem>>, %arg7: memref<16x32xf32, #tpu.memory_space<vmem>>) attributes {dimension_semantics = [#tpu.dimension_semantics<parallel>], iteration_bounds = array<i64: 1>, scalar_prefetch = 0 : i64, scratch_operands = 0 : i64, tpu.core_type = #tpu.core_type<tc>, window_params = [{transform_indices = @transform_0, window_bounds = array<i64: 16, 4>}, {transform_indices = @transform_1, window_bounds = array<i64: 16, 1>}, {pipeline_mode = #tpu.pipeline_mode<synchronous>, transform_indices = @transform_2, window_bounds = array<i64: 4, 32>}, {pipeline_mode = #tpu.pipeline_mode<synchronous>, transform_indices = @transform_3, window_bounds = array<i64: 1, 32>}, {pipeline_mode = #tpu.pipeline_mode<synchronous>, transform_indices = @transform_4, window_bounds = array<i64: 32, 32>}, {pipeline_mode = #tpu.pipeline_mode<synchronous>, transform_indices = @transform_5, window_bounds = array<i64: 1, 32>}, {transform_indices = @transform_6, window_bounds = array<i64: 16, 32>}]} {
    %c0 = arith.constant 0 : index
    %c0_0 = arith.constant 0 : index
    %0 = vector.load %arg1[%c0, %c0_0] : memref<16x4xf32, #tpu.memory_space<vmem>>, vector<16x4xf32>
    %1 = vector.extract_strided_slice %0 {offsets = [0, 0], sizes = [16, 1], strides = [1, 1]} : vector<16x4xf32> to vector<16x1xf32>
    %c0_1 = arith.constant 0 : index
    %c0_2 = arith.constant 0 : index
    %2 = vector.load %arg3[%c0_1, %c0_2] : memref<4x32xf32, #tpu.memory_space<vmem>>, vector<1x32xf32>
    %3 = vector.broadcast %1 : vector<16x1xf32> to vector<16x32xf32>
    %4 = vector.broadcast %2 : vector<1x32xf32> to vector<16x32xf32>
    %5 = arith.mulf %3, %4 : vector<16x32xf32>
    %6 = vector.extract_strided_slice %0 {offsets = [0, 1], sizes = [16, 1], strides = [1, 1]} : vector<16x4xf32> to vector<16x1xf32>
    %c1 = arith.constant 1 : index
    %c0_3 = arith.constant 0 : index
    %7 = vector.load %arg3[%c1, %c0_3] : memref<4x32xf32, #tpu.memory_space<vmem>>, vector<1x32xf32>
    %8 = vector.broadcast %6 : vector<16x1xf32> to vector<16x32xf32>
    %9 = vector.broadcast %7 : vector<1x32xf32> to vector<16x32xf32>
    %10 = arith.mulf %8, %9 : vector<16x32xf32>
    %11 = arith.addf %5, %10 : vector<16x32xf32>
    %12 = vector.extract_strided_slice %0 {offsets = [0, 2], sizes = [16, 1], strides = [1, 1]} : vector<16x4xf32> to vector<16x1xf32>
    %c2 = arith.constant 2 : index
    %c0_4 = arith.constant 0 : index
    %13 = vector.load %arg3[%c2, %c0_4] : memref<4x32xf32, #tpu.memory_space<vmem>>, vector<1x32xf32>
    %14 = vector.broadcast %12 : vector<16x1xf32> to vector<16x32xf32>
    %15 = vector.broadcast %13 : vector<1x32xf32> to vector<16x32xf32>
    %16 = arith.mulf %14, %15 : vector<16x32xf32>
    %17 = arith.addf %11, %16 : vector<16x32xf32>
    %18 = vector.extract_strided_slice %0 {offsets = [0, 3], sizes = [16, 1], strides = [1, 1]} : vector<16x4xf32> to vector<16x1xf32>
    %c3 = arith.constant 3 : index
    %c0_5 = arith.constant 0 : index
    %19 = vector.load %arg3[%c3, %c0_5] : memref<4x32xf32, #tpu.memory_space<vmem>>, vector<1x32xf32>
    %20 = vector.broadcast %18 : vector<16x1xf32> to vector<16x32xf32>
    %21 = vector.broadcast %19 : vector<1x32xf32> to vector<16x32xf32>
    %22 = arith.mulf %20, %21 : vector<16x32xf32>
    %23 = arith.addf %17, %22 : vector<16x32xf32>
    %c0_6 = arith.constant 0 : index
    %c0_7 = arith.constant 0 : index
    %24 = vector.load %arg4[%c0_6, %c0_7] : memref<1x32xf32, #tpu.memory_space<vmem>>, vector<1x32xf32>
    %25 = vector.broadcast %24 : vector<1x32xf32> to vector<16x32xf32>
    %26 = arith.addf %23, %25 : vector<16x32xf32>
    %27 = arith.negf %26 : vector<16x32xf32>
    %28 = math.exp %27 : vector<16x32xf32>
    %cst = arith.constant 1.000000e+00 : f32
    %29 = vector.broadcast %cst : f32 to vector<16x32xf32>
    %30 = arith.addf %29, %28 : vector<16x32xf32>
    %31 = arith.divf %29, %30 : vector<16x32xf32>
    %c0_8 = arith.constant 0 : index
    %c0_9 = arith.constant 0 : index
    %32 = vector.load %arg5[%c0_8, %c0_9] : memref<32x32xf32, #tpu.memory_space<vmem>>, vector<32x32xf32>
    %cst_10 = arith.constant dense<0.000000e+00> : vector<16x32xf32>
    %33 = tpu.matmul %31, %32, %cst_10 {dimension_numbers = #tpu.dot_dimension_numbers<[1], [0], [0], [1], [0, 0, 1, 1], [], []>} : vector<16x32xf32>, vector<32x32xf32>, vector<16x32xf32> -> vector<16x32xf32>
    %c0_11 = arith.constant 0 : index
    %c0_12 = arith.constant 0 : index
    %34 = vector.load %arg6[%c0_11, %c0_12] : memref<1x32xf32, #tpu.memory_space<vmem>>, vector<1x32xf32>
    %35 = vector.broadcast %34 : vector<1x32xf32> to vector<16x32xf32>
    %36 = arith.addf %33, %35 : vector<16x32xf32>
    %37 = math.tanh %36 : vector<16x32xf32>
    %c0_13 = arith.constant 0 : index
    %c0_14 = arith.constant 0 : index
    %38 = vector.load %arg2[%c0_13, %c0_14] : memref<16x1xf32, #tpu.memory_space<vmem>>, vector<16x1xf32>
    %39 = vector.broadcast %38 : vector<16x1xf32> to vector<16x32xf32>
    %40 = arith.mulf %37, %39 : vector<16x32xf32>
    %c0_15 = arith.constant 0 : index
    %c0_16 = arith.constant 0 : index
    %41 = vector.load %arg7[%c0_15, %c0_16] : memref<16x32xf32, #tpu.memory_space<vmem>>, vector<16x32xf32>
    tpu.vector_store %arg7[%c0_15, %c0_16], %40 {strides = array<i32>} : memref<16x32xf32, #tpu.memory_space<vmem>>, vector<16x32xf32>,
    return
  }
  func.func @transform_0(%arg0: i32) -> (i32, i32) {
    %c0_i32 = arith.constant 0 : i32
    %c0_i32_0 = arith.constant 0 : i32
    return %arg0, %c0_i32 : i32, i32
  }
  func.func @transform_1(%arg0: i32) -> (i32, i32) {
    %c0_i32 = arith.constant 0 : i32
    %c0_i32_0 = arith.constant 0 : i32
    return %arg0, %c0_i32 : i32, i32
  }
  func.func @transform_2(%arg0: i32) -> (i32, i32) {
    %c0_i32 = arith.constant 0 : i32
    %c0_i32_0 = arith.constant 0 : i32
    %c0_i32_1 = arith.constant 0 : i32
    return %c0_i32, %c0_i32_0 : i32, i32
  }
  func.func @transform_3(%arg0: i32) -> (i32, i32) {
    %c0_i32 = arith.constant 0 : i32
    %c0_i32_0 = arith.constant 0 : i32
    %c0_i32_1 = arith.constant 0 : i32
    return %c0_i32, %c0_i32_0 : i32, i32
  }
  func.func @transform_4(%arg0: i32) -> (i32, i32) {
    %c0_i32 = arith.constant 0 : i32
    %c0_i32_0 = arith.constant 0 : i32
    %c0_i32_1 = arith.constant 0 : i32
    return %c0_i32, %c0_i32_0 : i32, i32
  }
  func.func @transform_5(%arg0: i32) -> (i32, i32) {
    %c0_i32 = arith.constant 0 : i32
    %c0_i32_0 = arith.constant 0 : i32
    %c0_i32_1 = arith.constant 0 : i32
    return %c0_i32, %c0_i32_0 : i32, i32
  }
  func.func @transform_6(%arg0: i32) -> (i32, i32) {
    %c0_i32 = arith.constant 0 : i32
    %c0_i32_0 = arith.constant 0 : i32
    return %arg0, %c0_i32 : i32, i32
  }
}

</mosaic_0001>

<llo_original>
// kernel: tpu_custom_call.1
$region0: #{tpu_custom_call.1}
  #allocation0 [shape = 'u32[]', space=smem, size = 0x4, offset = 0x4, fixed_abs, tag = 'smem constant byte address 0x4 - core index']
  #allocation1 [shape = 'u32[144,128]{1,0:T(1,128)}', space=vmem, size = 0x12000, scoped, tag = 'internal scratch']
  %s0 = inlined_call_operand.vmem [shape: f32[16,4], index: 0, kind: input, shape index: {}]
  %s1 = inlined_call_operand.vmem [shape: f32[16,1], index: 1, kind: input, shape index: {}]
  %s2 = inlined_call_operand.vmem [shape: f32[4,32], index: 2, kind: input, shape index: {}]
  %s3 = inlined_call_operand.vmem [shape: f32[1,32], index: 3, kind: input, shape index: {}]
  %s4 = inlined_call_operand.vmem [shape: f32[32,32], index: 4, kind: input, shape index: {}]
  %s5 = inlined_call_operand.vmem [shape: f32[1,32], index: 5, kind: input, shape index: {}]
  %s6 = inlined_call_operand.hbm [shape: f32[16,32], index: 6, kind: output, shape index: {}]
  %s7 = sld [smem:[#allocation0]]
  $region34: #{tpu_custom_call.1} parent=0
    _
  %s9 = ssub.s32 1, %s7
  %s10 = scalar_select 0, %s9, %s7
  $region1: #{tpu_custom_call.1} parent=0
    #allocation2 [shape = 'u8[8192]{0}', space=vmem, size = 0x2000, scoped, tag = 'output window, operand 0, single buffered']
    #allocation3 [shape = 's32[1]{0}', space=sflag, size = 0x4, scoped, tag = 'scoped memory for tpu_custom_call.1']
    %11 = vsyncpa [#allocation3], 0
    // Predicated region
    $region2: #{tpu_custom_call.1} parent=1 // pred_check
      _
    $region3: #{tpu_custom_call.1} parent=1 // pred_check_branch
      %13 = sbr.rel (0) target = $region5
    $region4: #{tpu_custom_call.1} parent=1 // pred_region
      _
    $region5: #{tpu_custom_call.1} parent=1 // pred_fallthru
      _
    // Predicated region
    $region6: #{tpu_custom_call.1} parent=1 // pred_check
      _
    $region7: #{tpu_custom_call.1} parent=1 // pred_check_branch
      %15 = sbr.rel (0) target = $region9
    $region8: #{tpu_custom_call.1} parent=1 // pred_region
      _
    $region9: #{tpu_custom_call.1} parent=1 // pred_fallthru
      _
    // Predicated region
    $region10: #{tpu_custom_call.1} parent=1 // pred_check
      _
    $region11: #{tpu_custom_call.1} parent=1 // pred_check_branch
      %17 = sbr.rel (0) target = $region13
    $region12: #{tpu_custom_call.1} parent=1 // pred_region
      _
    $region13: #{tpu_custom_call.1} parent=1 // pred_fallthru
      _
    // Predicated region
    $region14: #{tpu_custom_call.1} parent=1 // pred_check
      _
    $region15: #{tpu_custom_call.1} parent=1 // pred_check_branch
      %19 = sbr.rel (0) target = $region17
    $region16: #{tpu_custom_call.1} parent=1 // pred_region
      _
    $region17: #{tpu_custom_call.1} parent=1 // pred_fallthru
      _
    // Predicated region
    $region18: #{tpu_custom_call.1} parent=1 // pred_check
      _
    $region19: #{tpu_custom_call.1} parent=1 // pred_check_branch
      %21 = sbr.rel (0) target = $region21
    $region20: #{tpu_custom_call.1} parent=1 // pred_region
      _
    $region21: #{tpu_custom_call.1} parent=1 // pred_fallthru
      _
    // Predicated region
    $region22: #{tpu_custom_call.1} parent=1 // pred_check
      _
    $region23: #{tpu_custom_call.1} parent=1 // pred_check_branch
      %23 = sbr.rel (0) target = $region25
    $region24: #{tpu_custom_call.1} parent=1 // pred_region
      _
    $region25: #{tpu_custom_call.1} parent=1 // pred_fallthru
      _
    %v24 = vld [vmem:[%s0] sm:$0xff]
    %v25 = vld [vmem:[%s0 + $0x8] sm:$0xff]
    %v26 = vld [vmem:[%s2] sm:$0x1]
    %28 = vset.pattern.permute.xlu0 0
    %29 = vperm.xlu0 %28, %v24
    %v30 = vpop.permute.xlu0 %29
    %33 = vset.pattern.permute.xlu0 0
    %34 = vperm.xlu0 %33, %v25
    %v35 = vpop.permute.xlu0 %34
    %v37 = vlaneseq
    %v38 = vshrl.u32 %v37, 7
    %v39 = vsub.s32 0, %v38
    %v40 = vrot.slane %v26, %v39
    %v41 = vmul.f32 %v30, %v40
    %v42 = vmul.f32 %v35, %v40
    %v43 = vld [vmem:[%s2 + $0x1] sm:$0x1]
    %44 = vset.pattern.permute.xlu0 1
    %45 = vperm.xlu0 %44, %v24
    %v46 = vpop.permute.xlu0 %45
    %48 = vset.pattern.permute.xlu0 1
    %49 = vperm.xlu0 %48, %v25
    %v50 = vpop.permute.xlu0 %49
    %v52 = vlaneseq
    %v53 = vshrl.u32 %v52, 7
    %v54 = vsub.s32 0, %v53
    %v55 = vrot.slane %v43, %v54
    %v56 = vmul.f32 %v46, %v55
    %v57 = vmul.f32 %v50, %v55
    %v58 = vadd.f32 %v41, %v56
    %v59 = vadd.f32 %v42, %v57
    %v60 = vld [vmem:[%s2 + $0x2] sm:$0x1]
    %61 = vset.pattern.permute.xlu0 2
    %62 = vperm.xlu0 %61, %v24
    %v63 = vpop.permute.xlu0 %62
    %65 = vset.pattern.permute.xlu0 2
    %66 = vperm.xlu0 %65, %v25
    %v67 = vpop.permute.xlu0 %66
    %v69 = vlaneseq
    %v70 = vshrl.u32 %v69, 7
    %v71 = vsub.s32 0, %v70
    %v72 = vrot.slane %v60, %v71
    %v73 = vmul.f32 %v63, %v72
    %v74 = vmul.f32 %v67, %v72
    %v75 = vadd.f32 %v58, %v73
    %v76 = vadd.f32 %v59, %v74
    %v77 = vld [vmem:[%s2 + $0x3] sm:$0x1]
    %78 = vset.pattern.permute.xlu0 3
    %79 = vperm.xlu0 %78, %v24
    %v80 = vpop.permute.xlu0 %79
    %82 = vset.pattern.permute.xlu0 3
    %83 = vperm.xlu0 %82, %v25
    %v84 = vpop.permute.xlu0 %83
    %v86 = vlaneseq
    %v87 = vshrl.u32 %v86, 7
    %v88 = vsub.s32 0, %v87
    %v89 = vrot.slane %v77, %v88
    %v90 = vmul.f32 %v80, %v89
    %v91 = vmul.f32 %v84, %v89
    %v92 = vadd.f32 %v75, %v90
    %v93 = vadd.f32 %v76, %v91
    %v94 = vld [vmem:[%s3] sm:$0x1]
    %v96 = vlaneseq
    %v97 = vshrl.u32 %v96, 7
    %v98 = vsub.s32 0, %v97
    %v99 = vrot.slane %v94, %v98
    %v101 = vadd.f32 %v92, %v99
    %v102 = vadd.f32 %v93, %v99
    %v103 = vxor.u32 %v101, 2147483648
    %v104 = vxor.u32 %v102, 2147483648
    %v105 = vmul.f32 %v103, 1.442695
    %v106 = vpow.pop %v105
    %v107 = vmul.f32 %v104, 1.442695
    %v108 = vpow.pop %v107
    %v109 = vadd.f32 %v106, 1.0
    %v110 = vadd.f32 %v108, 1.0
    %v111 = vrcp.pop %v109
    %v112 = vmul.f32 1.0, %v111
    %v113 = vrcp.pop %v110
    %v114 = vmul.f32 1.0, %v113
    %v115 = vld [vmem:[%s4] sm:$0xff]
    %v116 = vld [vmem:[%s4 + $0x8] sm:$0xff]
    %v117 = vld [vmem:[%s4 + $0x10] sm:$0xff]
    %v118 = vld [vmem:[%s4 + $0x18] sm:$0xff]
    %v119 = vld [vmem:[%s5] sm:$0x1]
    %v121 = vlaneseq
    %v122 = vshrl.u32 %v121, 7
    %v123 = vsub.s32 0, %v122
    %v124 = vrot.slane %v119, %v123
    %vm126 = vcmask 261120
    %v128 = vsel %vm126, %v112, 0
    %v131 = vsel %vm126, %v114, 0
    %133 = vmatprep.subr.mxu0 0.0
    %134 = vmatpush1.msra.mxu0 0.0
    %135 = vmatprep.subr.mxu0 0.0
    %136 = vmatpush1.msra.mxu0 0.0
    %137 = vmatprep.subr.mxu0 0.0
    %138 = vmatpush1.msra.mxu0 0.0
    %139 = vmatprep.subr.mxu0 0.0
    %140 = vmatpush1.msra.mxu0 0.0
    %141 = vmatprep.subr.mxu0 0.0
    %142 = vmatpush1.msra.mxu0 0.0
    %143 = vmatprep.subr.mxu0 0.0
    %144 = vmatpush1.msra.mxu0 0.0
    %145 = vmatprep.subr.mxu0 0.0
    %146 = vmatpush1.msra.mxu0 0.0
    %147 = vmatprep.subr.mxu0 0.0
    %148 = vmatpush1.msra.mxu0 0.0
    %149 = vmatprep.subr.mxu0 0.0
    %150 = vmatpush1.msra.mxu0 0.0
    %151 = vmatprep.subr.mxu0 0.0
    %152 = vmatpush1.msra.mxu0 0.0
    %153 = vmatprep.subr.mxu0 0.0
    %154 = vmatpush1.msra.mxu0 0.0
    %155 = vmatprep.subr.mxu0 0.0
    %156 = vmatpush1.msra.mxu0 0.0
    %157 = vmatprep.subr.mxu0 0.0
    %158 = vmatpush1.msra.mxu0 %v118
    %159 = vmatprep.subr.mxu0 0.0
    %160 = vmatpush1.msra.mxu0 %v117
    %161 = vmatprep.subr.mxu0 0.0
    %162 = vmatpush1.msra.mxu0 %v116
    %163 = vmatprep.subr.mxu0 0.0
    %164 = vmatpush1.msra.mxu0 %v115
    %165 = vmatprep.subr.mxu0 0.0
    %166 = vmatpush2.msra.mxu0 0.0
    %167 = vmatprep.subr.mxu0 0.0
    %168 = vmatpush2.msra.mxu0 0.0
    %169 = vmatprep.subr.mxu0 0.0
    %170 = vmatpush2.msra.mxu0 0.0
    %171 = vmatprep.subr.mxu0 0.0
    %172 = vmatpush2.msra.mxu0 0.0
    %173 = vmatprep.subr.mxu0 0.0
    %174 = vmatpush2.msra.mxu0 0.0
    %175 = vmatprep.subr.mxu0 0.0
    %176 = vmatpush2.msra.mxu0 0.0
    %177 = vmatprep.subr.mxu0 0.0
    %178 = vmatpush2.msra.mxu0 0.0
    %179 = vmatprep.subr.mxu0 0.0
    %180 = vmatpush2.msra.mxu0 0.0
    %181 = vmatprep.subr.mxu0 0.0
    %182 = vmatpush2.msra.mxu0 0.0
    %183 = vmatprep.subr.mxu0 0.0
    %184 = vmatpush2.msra.mxu0 0.0
    %185 = vmatprep.subr.mxu0 0.0
    %186 = vmatpush2.msra.mxu0 0.0
    %187 = vmatprep.subr.mxu0 0.0
    %188 = vmatpush2.msra.mxu0 0.0
    %189 = vmatprep.subr.mxu0 0.0
    %190 = vmatpush2.msra.mxu0 0.0
    %191 = vmatprep.subr.mxu0 0.0
    %192 = vmatpush2.msra.mxu0 0.0
    %193 = vmatprep.subr.mxu0 0.0
    %194 = vmatpush2.msra.mxu0 0.0
    %195 = vmatprep.subr.mxu0 0.0
    %196 = vmatpush2.msra.mxu0 0.0
    %197 = vmatprep.mubr.f32.mxu0 0.0
    %198 = vmatmul.mubr.f32.gmra.mxu0 %v128
    %v199 = vpop.f32.mrf.mxu0
    %v200 = vadd.f32 %v124, %v199
    %v201 = vpop.f32.mrf.mxu0
    %202 = vmatprep.mubr.f32.mxu0 0.0
    %203 = vmatmul.mubr.f32.gmra.mxu0 %v131
    %v204 = vpop.f32.mrf.mxu0
    %v205 = vadd.f32 %v124, %v204
    %v206 = vpop.f32.mrf.mxu0
    %207 = vdwg.mxu0
    %v208 = vtanh.pop %v200
    %v209 = vtanh.pop %v205
    %v210 = vld [vmem:[%s1] sm:$0xff]
    %v211 = vld [vmem:[%s1 + $0x8] sm:$0xff]
    %213 = vset.pattern.permute.xlu0 0
    %214 = vperm.xlu0 %213, %v210
    %v215 = vpop.permute.xlu0 %214
    %218 = vset.pattern.permute.xlu0 0
    %219 = vperm.xlu0 %218, %v211
    %v220 = vpop.permute.xlu0 %219
    %v222 = vmul.f32 %v208, %v215
    %v223 = vmul.f32 %v209, %v220
    %224 = vst.msk [vmem:[#allocation2] sm:$0xff] %vm126, %v222
    %225 = vst.msk [vmem:[#allocation2 + $0x8] sm:$0xff] %vm126, %v223
    // Predicated region
    $region26: #{tpu_custom_call.1} parent=1 // pred_check
      _
    $region27: #{tpu_custom_call.1} parent=1 // pred_check_branch
      %227 = sbr.rel (0) target = $region29
    $region28: #{tpu_custom_call.1} parent=1 // pred_region
      %s229 = ssub.s32 256, 256
      %230 = vsyncadd [#allocation3], %s229
      %s231 = sshll.u32 [#allocation2], 4
      %s232 = int_to_ptr.vmem [resolvable:$true] %s231
      %237 = dma.vmem_to_hbm [thread:$0]  %s232, 256, %s6, [#allocation3], 128, 128, 8
    $region29: #{tpu_custom_call.1} parent=1 // pred_fallthru
      _
    // Predicated region
    $region30: #{tpu_custom_call.1} parent=1 // pred_check
      _
    $region31: #{tpu_custom_call.1} parent=1 // pred_check_branch
      %239 = sbr.rel (0) target = $region33
    $region32: #{tpu_custom_call.1} parent=1 // pred_region
      %240 = dma.done [#allocation3], 256
    $region33: #{tpu_custom_call.1} parent=1 // pred_fallthru
      _
    %241 = vsyncpa [#allocation3], 1

</llo_original>
